<compile_context>
chip_gen: v7x
topology: tpu7x:2x2x1
jax: 0.10.0
libtpu: 0.0.40
codegen_flags: <defaults>
</compile_context>

<pallas_src>
import functools

import jax
import jax.numpy as jnp
from jax import lax
from jax.experimental import pallas as pl
from jax.experimental.pallas import tpu as pltpu

EPS = 1e-12
POWER_ITERATIONS = 1                    # PyTorch module default
_SMALL_PATH_BYTES = 4 * 1024 * 1024     # threshold for the fused single-kernel path


def _round_up(x, m):
    return (x + m - 1) // m * m


def _pad2d(a, rows, cols):
    pr, pc = rows - a.shape[0], cols - a.shape[1]
    if pr or pc:
        a = jnp.pad(a, ((0, pr), (0, pc)))
    return a


def _vmem_capacity_bytes():
    try:
        return int(pltpu.get_tpu_info().vmem_capacity_bytes)
    except Exception:
        return 64 * 1024 * 1024         # conservative fallback (v7x per-TC VMEM)


# ---------------------------------------------------------------------------
# Small-problem path: one gridless kernel (power iteration + sigma + matmul).
# ---------------------------------------------------------------------------
def _fused_small_kernel(x_ref, w_ref, u_ref, b_ref, y_ref, u_out_ref, v_out_ref):
    w = w_ref[...].astype(jnp.float32)          # (OUT_p, IN_p)
    u = u_ref[...].astype(jnp.float32)          # (1, OUT_p)

    wv = None
    v = None
    for _ in range(POWER_ITERATIONS):           # static, tiny trip count
        # v = l2normalize(W^T u): contract the OUT dims (W in native layout).
        wtu = lax.dot_general(u, w, (((1,), (0,)), ((), ())),
                              preferred_element_type=jnp.float32)    # (1, IN_p)
        v = wtu * (1.0 / (jnp.sqrt(jnp.sum(wtu * wtu)) + EPS))
        # u = l2normalize(W v): contract the IN (minor) dims of v and W.
        wv = lax.dot_general(v, w, (((1,), (1,)), ((), ())),
                             preferred_element_type=jnp.float32)     # (1, OUT_p)
        u = wv * (1.0 / (jnp.sqrt(jnp.sum(wv * wv)) + EPS))

    sigma = jnp.sum(u * wv)                     # u . (W v) with cached Wv
    inv_sigma = 1.0 / sigma

    # y = (x @ W^T) * inv_sigma + b  -- inv_sigma folded into the epilogue.
    xw = lax.dot_general(x_ref[...], w, (((1,), (1,)), ((), ())),
                         preferred_element_type=jnp.float32)         # (B_p, OUT_p)
    y_ref[...] = (xw * inv_sigma + b_ref[...].astype(jnp.float32)).astype(y_ref.dtype)
    u_out_ref[...] = u.astype(u_out_ref.dtype)
    v_out_ref[...] = v.astype(v_out_ref.dtype)


# ---------------------------------------------------------------------------
# Large-problem path, Stage 1: power iteration with W streamed as column
# panels on a 1-D grid over IN (double-buffered by the Pallas pipeline).
# ---------------------------------------------------------------------------
def _wtu_kernel(u_ref, w_ref, wtu_ref, ssq_ref):
    """wtu[:, k-block] = u @ W[:, k-block];  ssq accumulates ||wtu||^2."""
    k = pl.program_id(0)
    wtu = lax.dot_general(u_ref[...], w_ref[...].astype(jnp.float32),
                          (((1,), (0,)), ((), ())),
                          preferred_element_type=jnp.float32)        # (1, tk_s)
    wtu_ref[...] = wtu

    @pl.when(k == 0)
    def _init():
        ssq_ref[...] = jnp.zeros_like(ssq_ref)

    ssq_ref[...] += jnp.sum(wtu * wtu, keepdims=True)


def _wv_kernel(v_ref, w_ref, wv_ref, ssq_ref):
    """wv += v[:, k-block] @ W[:, k-block]^T;  ssq = ||wv||^2 at the last block."""
    k = pl.program_id(0)

    @pl.when(k == 0)
    def _init():
        wv_ref[...] = jnp.zeros_like(wv_ref)

    wv_ref[...] += lax.dot_general(v_ref[...], w_ref[...].astype(jnp.float32),
                                   (((1,), (1,)), ((), ())),
                                   preferred_element_type=jnp.float32)  # (1, OUT_p)

    @pl.when(k == pl.num_programs(0) - 1)
    def _finalize():
        wv = wv_ref[...]
        ssq_ref[...] = jnp.sum(wv * wv, keepdims=True)


# ---------------------------------------------------------------------------
# Large-problem path, Stage 2: tiled, pipelined  y = (x @ W^T) * inv_sigma + b
# Kernel args: scalar-prefetch ref first, then inputs, outputs, scratch.
# ---------------------------------------------------------------------------
def _scaled_matmul_kernel(inv_sigma_ref, x_ref, w_ref, b_ref, y_ref, acc_ref,
                          *, use_bf16):
    k = pl.program_id(2)

    @pl.when(k == 0)
    def _init():
        acc_ref[...] = jnp.zeros_like(acc_ref)

    if use_bf16:  # optional fast path: bf16 MXU operands, f32 accumulation
        a, b = x_ref[...].astype(jnp.bfloat16), w_ref[...].astype(jnp.bfloat16)
    else:
        a, b = x_ref[...], w_ref[...]

    # (tm, tk) . (tn, tk) contracting the IN dims -> (tm, tn).  This q.k^T
    # style contraction is the standard MXU pattern (same as flash attention);
    # W is consumed in its native (OUT, IN) layout, no transposed copy.
    acc_ref[...] += lax.dot_general(a, b, (((1,), (1,)), ((), ())),
                                    preferred_element_type=jnp.float32)

    @pl.when(k == pl.num_programs(2) - 1)
    def _finalize():
        inv_sigma = inv_sigma_ref[0]            # f32 scalar from SMEM prefetch
        y = acc_ref[...] * inv_sigma + b_ref[...].astype(jnp.float32)
        y_ref[...] = y.astype(y_ref.dtype)


# ---------------------------------------------------------------------------
# Wrapper
# ---------------------------------------------------------------------------
def spectral_norm_linear(x, w_bar, u, v, bias, *, use_bf16_matmul=False):
    """SpectralNorm(nn.Linear).forward(x).

    Returns (y, u_new, v_new): the Linear output plus the updated power
    iteration vectors (which the PyTorch module mutates in place).
    """
    B, IN = x.shape
    OUT, _ = w_bar.shape
    u2 = u.reshape(1, -1).astype(jnp.float32)
    b2 = bias.reshape(1, -1)
    del v  # like the PyTorch module, v is overwritten before it is ever read

    vmem = pltpu.MemorySpace.VMEM
    vmem_cap = _vmem_capacity_bytes()

    # ---------------- small path: single fused kernel -----------------------
    B_p8 = _round_up(B, 8)
    OUT_p128 = _round_up(OUT, 128)
    IN_p128 = _round_up(IN, 128)
    small_bytes = 4 * (B_p8 * IN_p128 + OUT_p128 * IN_p128 + B_p8 * OUT_p128
                       + 2 * OUT_p128 + 2 * IN_p128)
    if small_bytes <= _SMALL_PATH_BYTES:
        x_p = _pad2d(x, B_p8, IN_p128)
        w_p = _pad2d(w_bar, OUT_p128, IN_p128)
        u_p = _pad2d(u2, 1, OUT_p128)
        b_p = _pad2d(b2, 1, OUT_p128)
        y_p, u_new_p, v_new_p = pl.pallas_call(
            _fused_small_kernel,
            out_shape=(jax.ShapeDtypeStruct((B_p8, OUT_p128), x.dtype),
                       jax.ShapeDtypeStruct((1, OUT_p128), jnp.float32),
                       jax.ShapeDtypeStruct((1, IN_p128), jnp.float32)),
            in_specs=[pl.BlockSpec(memory_space=vmem)] * 4,
            out_specs=(pl.BlockSpec(memory_space=vmem),) * 3,
            compiler_params=pltpu.CompilerParams(
                vmem_limit_bytes=min(vmem_cap, 32 * 1024 * 1024)),
        )(x_p, w_p, u_p, b_p)
        return y_p[:B, :OUT], u_new_p[:, :OUT], v_new_p[:, :IN]

    # ---------------- large path: tiled Stage 1 + Stage 2 --------------------
    # Per-generation tiling: v5e/v6e have 128 MiB VMEM, v7x only 64 MiB.
    big_vmem = vmem_cap >= 96 * 1024 * 1024
    tm_cap, tn_cap, tk_cap = (1024, 1024, 2048) if big_vmem else (512, 512, 1024)
    s2_vmem = min((vmem_cap * 3) // 4, (96 if big_vmem else 32) * 1024 * 1024)

    tm = min(tm_cap, _round_up(B, 8))
    tn = min(tn_cap, _round_up(OUT, 128))
    tk = min(tk_cap, _round_up(IN, 128))

    # v7x megacore (2 TCs; also the only <96 MiB-VMEM generation): keep at
    # least 2 tiles on the "parallel" axes so neither TensorCore idles.
    if not big_vmem:
        def _n_parallel(tn_):
            return (_round_up(B, tm) // tm) * (_round_up(OUT, tn_) // tn_)
        while tn > 128 and _n_parallel(tn) < 2:
            tn = _round_up(max(128, tn // 2), 128)

    B_p = _round_up(B, tm)
    OUT_p = _round_up(OUT, tn)
    IN_p = _round_up(IN, tk)

    x_p = _pad2d(x, B_p, IN_p)
    w_p = _pad2d(w_bar, OUT_p, IN_p)
    u_p = _pad2d(u2, 1, OUT_p)
    b_p = _pad2d(b2, 1, OUT_p)

    # Stage-1 column-panel width: largest multiple of 128 dividing IN_p whose
    # double-buffered (OUT_p, tk_s) f32 panel stays within a ~16 MiB budget.
    s1_budget = 16 * 1024 * 1024
    tk_s = 128
    for cand in range(128, min(IN_p, 2048) + 1, 128):
        if IN_p % cand == 0 and 8 * OUT_p * cand <= s1_budget:
            tk_s = cand
    n_k = IN_p // tk_s
    # TODO(synk): for OUT so large that even a 128-wide double-buffered panel
    # exceeds VMEM, Stage 1 would additionally need tiling over OUT.
    s1_need = 8 * OUT_p * tk_s + 64 * (OUT_p + tk_s) + (4 << 20)
    s1_vmem = min(max(32 * 1024 * 1024, s1_need),
                  max(32 * 1024 * 1024, (vmem_cap * 3) // 4))
    s1_params = pltpu.CompilerParams(dimension_semantics=("arbitrary",),
                                     vmem_limit_bytes=s1_vmem)

    # ---- Stage 1: power iteration (W streamed twice per iteration) ----------
    u_cur = u_p                                  # (1, OUT_p) f32
    v_cur = None
    ssq_wv = None
    for _ in range(POWER_ITERATIONS):
        wtu, ssq_wtu = pl.pallas_call(
            _wtu_kernel,
            out_shape=(jax.ShapeDtypeStruct((1, IN_p), jnp.float32),
                       jax.ShapeDtypeStruct((1, 1), jnp.float32)),
            grid_spec=pltpu.PrefetchScalarGridSpec(
                num_scalar_prefetch=0, grid=(n_k,),
                in_specs=[pl.BlockSpec((1, OUT_p), lambda k: (0, 0)),       # u
                          pl.BlockSpec((OUT_p, tk_s), lambda k: (0, k))],   # W panel
                out_specs=(pl.BlockSpec((1, tk_s), lambda k: (0, k)),       # wtu blk
                           pl.BlockSpec((1, 1), lambda k: (0, 0)))),        # ssq acc
            compiler_params=s1_params,
        )(u_cur, w_p)
        # O(IN) glue: normalize v (exact match of l2normalize eps placement).
        v_cur = wtu * (1.0 / (jnp.sqrt(ssq_wtu[0, 0]) + EPS))

        wv, ssq_wv = pl.pallas_call(
            _wv_kernel,
            out_shape=(jax.ShapeDtypeStruct((1, OUT_p), jnp.float32),
                       jax.ShapeDtypeStruct((1, 1), jnp.float32)),
            grid_spec=pltpu.PrefetchScalarGridSpec(
                num_scalar_prefetch=0, grid=(n_k,),
                in_specs=[pl.BlockSpec((1, tk_s), lambda k: (0, k)),        # v blk
                          pl.BlockSpec((OUT_p, tk_s), lambda k: (0, k))],   # W panel
                out_specs=(pl.BlockSpec((1, OUT_p), lambda k: (0, 0)),      # wv acc
                           pl.BlockSpec((1, 1), lambda k: (0, 0)))),        # ssq
            compiler_params=s1_params,
        )(v_cur, w_p)
        # O(OUT) glue: normalize u.
        u_cur = wv * (1.0 / (jnp.sqrt(ssq_wv[0, 0]) + EPS))

    # sigma = u_new . (W v) with u_new = Wv / (||Wv|| + EPS)
    #       = ||Wv||^2 / (||Wv|| + EPS)   (reuses the cached ||Wv||^2)
    norm_wv = jnp.sqrt(ssq_wv[0, 0])
    sigma = ssq_wv[0, 0] / (norm_wv + EPS)
    inv_sigma_s = (1.0 / sigma).reshape(1).astype(jnp.float32)  # SMEM prefetch

    # ---- Stage 2: tiled, pipelined scaled matmul -----------------------------
    grid = (B_p // tm, OUT_p // tn, IN_p // tk)
    n_i, n_j = grid[0], grid[1]
    x_item = jnp.dtype(x.dtype).itemsize
    w_item = jnp.dtype(w_bar.dtype).itemsize
    bytes_accessed = int(n_j * x_p.size * x_item          # x re-streamed per j tile
                         + n_i * w_p.size * w_item        # W re-streamed per i tile
                         + B_p * OUT_p * x_item           # y written once
                         + b_p.size * jnp.dtype(b_p.dtype).itemsize)
    y_p = pl.pallas_call(
        functools.partial(_scaled_matmul_kernel, use_bf16=use_bf16_matmul),
        out_shape=jax.ShapeDtypeStruct((B_p, OUT_p), x.dtype),
        grid_spec=pltpu.PrefetchScalarGridSpec(
            num_scalar_prefetch=1,
            grid=grid,
            in_specs=[
                pl.BlockSpec((tm, tk), lambda i, j, k, sig: (i, k)),   # x
                pl.BlockSpec((tn, tk), lambda i, j, k, sig: (j, k)),   # W (native)
                pl.BlockSpec((1, tn), lambda i, j, k, sig: (0, j)),    # bias
            ],
            out_specs=pl.BlockSpec((tm, tn), lambda i, j, k, sig: (i, j)),
            scratch_shapes=[pltpu.VMEM((tm, tn), jnp.float32)],
        ),
        compiler_params=pltpu.CompilerParams(
            dimension_semantics=("parallel", "parallel", "arbitrary"),
            vmem_limit_bytes=s2_vmem),
        cost_estimate=pl.CostEstimate(
            flops=2 * B_p * OUT_p * IN_p,
            transcendentals=0,
            bytes_accessed=bytes_accessed),
    )(inv_sigma_s, x_p, w_p, b_p)

    return y_p[:B, :OUT], u_cur[:, :OUT], v_cur[:, :IN]


# ---------------------------------------------------------------------------
# Pure-JAX reference (mirrors the PyTorch module) + tests.
# ---------------------------------------------------------------------------
def _l2normalize(a):
    return a / (jnp.sqrt(jnp.sum(a * a)) + EPS)


def _reference(x, w_bar, u, v, bias):
    u_, v_ = u[0], v[0]
    for _ in range(POWER_ITERATIONS):
        v_ = _l2normalize(w_bar.T @ u_)
        u_ = _l2normalize(w_bar @ v_)
    sigma = jnp.dot(u_, w_bar @ v_)
    y = x @ (w_bar / sigma).T + bias[0]
    return y, u_[None, :], v_[None, :]


def _run_case(key, B, IN, OUT, atol, rtol):
    kx, kw, kb, ku, kv = jax.random.split(key, 5)
    x = jax.random.normal(kx, (B, IN), dtype=jnp.float32)
    w_bar = jax.random.normal(kw, (OUT, IN), dtype=jnp.float32) * 0.1
    bias = jax.random.normal(kb, (1, OUT), dtype=jnp.float32) * 0.1
    u = _l2normalize(jax.random.normal(ku, (1, OUT), dtype=jnp.float32))
    v = _l2normalize(jax.random.normal(kv, (1, IN), dtype=jnp.float32))

    y, u_new, v_new = spectral_norm_linear(x, w_bar, u, v, bias)
    jax.block_until_ready((y, u_new, v_new))

    with jax.default_matmul_precision("highest"):
        y_exp, u_exp, v_exp = _reference(x, w_bar, u, v, bias)
    assert jnp.allclose(y, y_exp, atol=atol, rtol=rtol), "y mismatch vs reference"
    assert jnp.allclose(u_new, u_exp, atol=atol, rtol=rtol), "u mismatch vs reference"
    assert jnp.allclose(v_new, v_exp, atol=atol, rtol=rtol), "v mismatch vs reference"


if __name__ == "__main__":
    key = jax.random.PRNGKey(0)
    k_small, k_large = jax.random.split(key)

    # Inner module of the test: nn.Linear(in_features=32, out_features=16).
    # Small shapes exercise the fused single-kernel path.
    _run_case(k_small, B=8, IN=32, OUT=16, atol=1e-5, rtol=1e-5)

    # A moderately sized Linear exercises the tiled Stage-1 + Stage-2 path.
    _run_case(k_large, B=256, IN=2048, OUT=512, atol=1e-3, rtol=1e-3)

    print("KERNEL_OK")
</pallas_src>

<mosaic_0001>
module attributes {stable_mosaic.version = 11 : i64} {
  func.func @_fused_small_kernel(%arg0: memref<8x128xf32, #tpu.memory_space<vmem>>, %arg1: memref<128x128xf32, #tpu.memory_space<vmem>>, %arg2: memref<1x128xf32, #tpu.memory_space<vmem>>, %arg3: memref<1x128xf32, #tpu.memory_space<vmem>>, %arg4: memref<8x128xf32, #tpu.memory_space<vmem>>, %arg5: memref<1x128xf32, #tpu.memory_space<vmem>>, %arg6: memref<1x128xf32, #tpu.memory_space<vmem>>) attributes {dimension_semantics = [], scalar_prefetch = 0 : i64, scratch_operands = 0 : i64, tpu.core_type = #tpu.core_type<tc>} {
    %c0 = arith.constant 0 : index
    %c0_0 = arith.constant 0 : index
    %0 = vector.load %arg1[%c0, %c0_0] : memref<128x128xf32, #tpu.memory_space<vmem>>, vector<128x128xf32>
    %c0_1 = arith.constant 0 : index
    %c0_2 = arith.constant 0 : index
    %1 = vector.load %arg2[%c0_1, %c0_2] : memref<1x128xf32, #tpu.memory_space<vmem>>, vector<1x128xf32>
    %cst = arith.constant dense<0.000000e+00> : vector<1x128xf32>
    %2 = tpu.matmul %1, %0, %cst {dimension_numbers = #tpu.dot_dimension_numbers<[1], [0], [0], [1], [0, 0, 1, 1], [], []>} : vector<1x128xf32>, vector<128x128xf32>, vector<1x128xf32> -> vector<1x128xf32>
    %3 = arith.mulf %2, %2 : vector<1x128xf32>
    %4 = vector.shape_cast %3 : vector<1x128xf32> to vector<1x1x128xf32>
    %cst_3 = arith.constant dense<0.000000e+00> : vector<1xf32>
    %5 = vector.multi_reduction <add>, %4, %cst_3 [1, 2] : vector<1x1x128xf32> to vector<1xf32>
    %6 = vector.shape_cast %5 : vector<1xf32> to vector<1x1x1xf32>
    %7 = vector.extract %6[0, 0, 0] : f32 from vector<1x1x1xf32>
    %8 = math.sqrt %7 : f32
    %cst_4 = arith.constant 9.99999996E-13 : f32
    %9 = arith.addf %8, %cst_4 : f32
    %cst_5 = arith.constant 1.000000e+00 : f32
    %10 = arith.divf %cst_5, %9 : f32
    %11 = vector.broadcast %10 : f32 to vector<1x128xf32>
    %12 = arith.mulf %2, %11 : vector<1x128xf32>
    %cst_6 = arith.constant dense<0.000000e+00> : vector<1x128xf32>
    %13 = tpu.matmul %12, %0, %cst_6 {dimension_numbers = #tpu.dot_dimension_numbers<[1], [1], [0], [0], [0, 0, 1, 0], [], []>} : vector<1x128xf32>, vector<128x128xf32>, vector<1x128xf32> -> vector<1x128xf32>
    %14 = arith.mulf %13, %13 : vector<1x128xf32>
    %15 = vector.shape_cast %14 : vector<1x128xf32> to vector<1x1x128xf32>
    %cst_7 = arith.constant dense<0.000000e+00> : vector<1xf32>
    %16 = vector.multi_reduction <add>, %15, %cst_7 [1, 2] : vector<1x1x128xf32> to vector<1xf32>
    %17 = vector.shape_cast %16 : vector<1xf32> to vector<1x1x1xf32>
    %18 = vector.extract %17[0, 0, 0] : f32 from vector<1x1x1xf32>
    %19 = math.sqrt %18 : f32
    %cst_8 = arith.constant 9.99999996E-13 : f32
    %20 = arith.addf %19, %cst_8 : f32
    %cst_9 = arith.constant 1.000000e+00 : f32
    %21 = arith.divf %cst_9, %20 : f32
    %22 = vector.broadcast %21 : f32 to vector<1x128xf32>
    %23 = arith.mulf %13, %22 : vector<1x128xf32>
    %24 = arith.mulf %23, %13 : vector<1x128xf32>
    %25 = vector.shape_cast %24 : vector<1x128xf32> to vector<1x1x128xf32>
    %cst_10 = arith.constant dense<0.000000e+00> : vector<1xf32>
    %26 = vector.multi_reduction <add>, %25, %cst_10 [1, 2] : vector<1x1x128xf32> to vector<1xf32>
    %27 = vector.shape_cast %26 : vector<1xf32> to vector<1x1x1xf32>
    %28 = vector.extract %27[0, 0, 0] : f32 from vector<1x1x1xf32>
    %cst_11 = arith.constant 1.000000e+00 : f32
    %29 = arith.divf %cst_11, %28 : f32
    %c0_12 = arith.constant 0 : index
    %c0_13 = arith.constant 0 : index
    %30 = vector.load %arg0[%c0_12, %c0_13] : memref<8x128xf32, #tpu.memory_space<vmem>>, vector<8x128xf32>
    %cst_14 = arith.constant dense<0.000000e+00> : vector<8x128xf32>
    %31 = tpu.matmul %30, %0, %cst_14 {dimension_numbers = #tpu.dot_dimension_numbers<[1], [1], [0], [0], [0, 0, 1, 0], [], []>} : vector<8x128xf32>, vector<128x128xf32>, vector<8x128xf32> -> vector<8x128xf32>
    %32 = vector.broadcast %29 : f32 to vector<8x128xf32>
    %33 = arith.mulf %31, %32 : vector<8x128xf32>
    %c0_15 = arith.constant 0 : index
    %c0_16 = arith.constant 0 : index
    %34 = vector.load %arg3[%c0_15, %c0_16] : memref<1x128xf32, #tpu.memory_space<vmem>>, vector<1x128xf32>
    %35 = vector.broadcast %34 : vector<1x128xf32> to vector<8x128xf32>
    %36 = arith.addf %33, %35 : vector<8x128xf32>
    %c0_17 = arith.constant 0 : index
    %c0_18 = arith.constant 0 : index
    %37 = vector.load %arg4[%c0_17, %c0_18] : memref<8x128xf32, #tpu.memory_space<vmem>>, vector<8x128xf32>
    tpu.vector_store %arg4[%c0_17, %c0_18], %36 {strides = array<i32>} : memref<8x128xf32, #tpu.memory_space<vmem>>, vector<8x128xf32>,
    %c0_19 = arith.constant 0 : index
    %c0_20 = arith.constant 0 : index
    %38 = vector.load %arg5[%c0_19, %c0_20] : memref<1x128xf32, #tpu.memory_space<vmem>>, vector<1x128xf32>
    tpu.vector_store %arg5[%c0_19, %c0_20], %23 {strides = array<i32>} : memref<1x128xf32, #tpu.memory_space<vmem>>, vector<1x128xf32>,
    %c0_21 = arith.constant 0 : index
    %c0_22 = arith.constant 0 : index
    %39 = vector.load %arg6[%c0_21, %c0_22] : memref<1x128xf32, #tpu.memory_space<vmem>>, vector<1x128xf32>
    tpu.vector_store %arg6[%c0_21, %c0_22], %12 {strides = array<i32>} : memref<1x128xf32, #tpu.memory_space<vmem>>, vector<1x128xf32>,
    return
  }
}

</mosaic_0001>

<llo_original>
// kernel: tpu_custom_call.1
$region0: #{tpu_custom_call.1}
  #allocation0 [shape = 'u32[]', space=smem, size = 0x4, offset = 0x4, fixed_abs, tag = 'smem constant byte address 0x4 - core index']
  #allocation1 [shape = 'u32[144,128]{1,0:T(1,128)}', space=vmem, size = 0x12000, scoped, tag = 'internal scratch']
  %s0 = inlined_call_operand.hbm [shape: f32[8,128], index: 0, kind: input, shape index: {}]
  %s1 = inlined_call_operand.hbm [shape: f32[128,128], index: 1, kind: input, shape index: {}]
  %s2 = inlined_call_operand.vmem [shape: f32[1,128], index: 2, kind: input, shape index: {}]
  %s3 = inlined_call_operand.vmem [shape: f32[1,128], index: 3, kind: input, shape index: {}]
  %s4 = inlined_call_operand.hbm [shape: f32[8,128], index: 4, kind: output, shape index: {0}]
  %s5 = inlined_call_operand.hbm [shape: f32[1,128], index: 5, kind: output, shape index: {1}]
  %s6 = inlined_call_operand.hbm [shape: f32[1,128], index: 6, kind: output, shape index: {2}]
  %7 = xla_tuple %s4, %s5, %s6
  %s8 = sld [smem:[#allocation0]]
  $region50: #{tpu_custom_call.1} parent=0
    _
  %s10 = ssub.s32 1, %s8
  %s11 = scalar_select 0, %s10, %s8
  $region1: #{tpu_custom_call.1} parent=0
    #allocation2 [shape = 'u8[4096]{0}', space=vmem, size = 0x1000, scoped, tag = 'input window, operand 0, single buffered']
    #allocation3 [shape = 's32[1]{0}', space=sflag, size = 0x4, scoped, tag = 'scoped memory for tpu_custom_call.1']
    #allocation4 [shape = 's32[1]{0}', space=sflag, size = 0x4, scoped, tag = 'scoped memory for tpu_custom_call.1']
    #allocation5 [shape = 'u8[65536]{0}', space=vmem, size = 0x10000, scoped, tag = 'input window, operand 1, single buffered']
    #allocation6 [shape = 's32[1]{0}', space=sflag, size = 0x4, scoped, tag = 'scoped memory for tpu_custom_call.1']
    #allocation7 [shape = 'u8[4096]{0}', space=vmem, size = 0x1000, scoped, tag = 'output window, operand 0, single buffered']
    #allocation8 [shape = 'u8[512]{0}', space=vmem, size = 0x400, scoped, tag = 'output window, operand 1, single buffered']
    #allocation9 [shape = 's32[1]{0}', space=sflag, size = 0x4, scoped, tag = 'scoped memory for tpu_custom_call.1']
    #allocation10 [shape = 'u8[512]{0}', space=vmem, size = 0x400, scoped, tag = 'output window, operand 2, single buffered']
    %12 = vsyncpa [#allocation3], 0
    %13 = vsyncpa [#allocation6], 0
    %14 = vsyncpa [#allocation4], 0
    %15 = vsyncpa [#allocation9], 0
    // Predicated region
    $region2: #{tpu_custom_call.1} parent=1 // pred_check
      _
    $region3: #{tpu_custom_call.1} parent=1 // pred_check_branch
      %17 = sbr.rel (0) target = $region5
    $region4: #{tpu_custom_call.1} parent=1 // pred_region
      %s19 = ssub.s32 128, 128
      %20 = vsyncadd [#allocation3], %s19
      %s22 = sshll.u32 [#allocation2], 4
      %s23 = int_to_ptr.vmem [resolvable:$true] %s22
      %25 = dma.hbm_to_vmem [thread:$0]  %s0, 128, %s23, [#allocation3]
    $region5: #{tpu_custom_call.1} parent=1 // pred_fallthru
      _
    // Predicated region
    $region6: #{tpu_custom_call.1} parent=1 // pred_check
      _
    $region7: #{tpu_custom_call.1} parent=1 // pred_check_branch
      %27 = sbr.rel (0) target = $region9
    $region8: #{tpu_custom_call.1} parent=1 // pred_region
      %s29 = ssub.s32 2048, 2048
      %30 = vsyncadd [#allocation6], %s29
      %s31 = sshll.u32 [#allocation5], 4
      %s32 = int_to_ptr.vmem [resolvable:$true] %s31
      %37 = dma.hbm_to_vmem [thread:$0]  %s1, 2048, %s32, [#allocation6], 128, 128, 8
    $region9: #{tpu_custom_call.1} parent=1 // pred_fallthru
      _
    // Predicated region
    $region10: #{tpu_custom_call.1} parent=1 // pred_check
      _
    $region11: #{tpu_custom_call.1} parent=1 // pred_check_branch
      %39 = sbr.rel (0) target = $region13
    $region12: #{tpu_custom_call.1} parent=1 // pred_region
      _
    $region13: #{tpu_custom_call.1} parent=1 // pred_fallthru
      _
    // Predicated region
    $region14: #{tpu_custom_call.1} parent=1 // pred_check
      _
    $region15: #{tpu_custom_call.1} parent=1 // pred_check_branch
      %41 = sbr.rel (0) target = $region17
    $region16: #{tpu_custom_call.1} parent=1 // pred_region
      _
    $region17: #{tpu_custom_call.1} parent=1 // pred_fallthru
      _
    // Predicated region
    $region18: #{tpu_custom_call.1} parent=1 // pred_check
      _
    $region19: #{tpu_custom_call.1} parent=1 // pred_check_branch
      %43 = sbr.rel (0) target = $region21
    $region20: #{tpu_custom_call.1} parent=1 // pred_region
      %44 = dma.done [#allocation3], 128
    $region21: #{tpu_custom_call.1} parent=1 // pred_fallthru
      _
    // Predicated region
    $region22: #{tpu_custom_call.1} parent=1 // pred_check
      _
    $region23: #{tpu_custom_call.1} parent=1 // pred_check_branch
      %46 = sbr.rel (0) target = $region25
    $region24: #{tpu_custom_call.1} parent=1 // pred_region
      %47 = dma.done [#allocation6], 2048
    $region25: #{tpu_custom_call.1} parent=1 // pred_fallthru
      _
    %v48 = vld [vmem:[#allocation5] sm:$0xff]
    %v49 = vld [vmem:[#allocation5 + $0x8] sm:$0xff]
    %v50 = vld [vmem:[#allocation5 + $0x10] sm:$0xff]
    %v51 = vld [vmem:[#allocation5 + $0x18] sm:$0xff]
    %v52 = vld [vmem:[#allocation5 + $0x20] sm:$0xff]
    %v53 = vld [vmem:[#allocation5 + $0x28] sm:$0xff]
    %v54 = vld [vmem:[#allocation5 + $0x30] sm:$0xff]
    %v55 = vld [vmem:[#allocation5 + $0x38] sm:$0xff]
    %v56 = vld [vmem:[#allocation5 + $0x40] sm:$0xff]
    %v57 = vld [vmem:[#allocation5 + $0x48] sm:$0xff]
    %v58 = vld [vmem:[#allocation5 + $0x50] sm:$0xff]
    %v59 = vld [vmem:[#allocation5 + $0x58] sm:$0xff]
    %v60 = vld [vmem:[#allocation5 + $0x60] sm:$0xff]
    %v61 = vld [vmem:[#allocation5 + $0x68] sm:$0xff]
    %v62 = vld [vmem:[#allocation5 + $0x70] sm:$0xff]
    %v63 = vld [vmem:[#allocation5 + $0x78] sm:$0xff]
    %v64 = vld [vmem:[%s2] sm:$0x1]
    %65 = vmatprep.subr.mxu0 0.0
    %66 = vmatpush1.msra.mxu0 %v48
    %67 = vmatprep.subr.mxu0 0.0
    %68 = vmatpush1.msra.mxu0 %v49
    %69 = vmatprep.subr.mxu0 0.0
    %70 = vmatpush1.msra.mxu0 %v50
    %71 = vmatprep.subr.mxu0 0.0
    %72 = vmatpush1.msra.mxu0 %v51
    %73 = vmatprep.subr.mxu0 0.0
    %74 = vmatpush1.msra.mxu0 %v52
    %75 = vmatprep.subr.mxu0 0.0
    %76 = vmatpush1.msra.mxu0 %v53
    %77 = vmatprep.subr.mxu0 0.0
    %78 = vmatpush1.msra.mxu0 %v54
    %79 = vmatprep.subr.mxu0 0.0
    %80 = vmatpush1.msra.mxu0 %v55
    %81 = vmatprep.subr.mxu0 0.0
    %82 = vmatpush1.msra.mxu0 %v56
    %83 = vmatprep.subr.mxu0 0.0
    %84 = vmatpush1.msra.mxu0 %v57
    %85 = vmatprep.subr.mxu0 0.0
    %86 = vmatpush1.msra.mxu0 %v58
    %87 = vmatprep.subr.mxu0 0.0
    %88 = vmatpush1.msra.mxu0 %v59
    %89 = vmatprep.subr.mxu0 0.0
    %90 = vmatpush1.msra.mxu0 %v60
    %91 = vmatprep.subr.mxu0 0.0
    %92 = vmatpush1.msra.mxu0 %v61
    %93 = vmatprep.subr.mxu0 0.0
    %94 = vmatpush1.msra.mxu0 %v62
    %95 = vmatprep.subr.mxu0 0.0
    %96 = vmatpush1.msra.mxu0 %v63
    %97 = vmatprep.subr.mxu0 0.0
    %98 = vmatpush1.msra.mxu0 0.0
    %99 = vmatprep.subr.mxu0 0.0
    %100 = vmatpush1.msra.mxu0 0.0
    %101 = vmatprep.subr.mxu0 0.0
    %102 = vmatpush1.msra.mxu0 0.0
    %103 = vmatprep.subr.mxu0 0.0
    %104 = vmatpush1.msra.mxu0 0.0
    %105 = vmatprep.subr.mxu0 0.0
    %106 = vmatpush1.msra.mxu0 0.0
    %107 = vmatprep.subr.mxu0 0.0
    %108 = vmatpush1.msra.mxu0 0.0
    %109 = vmatprep.subr.mxu0 0.0
    %110 = vmatpush1.msra.mxu0 0.0
    %111 = vmatprep.subr.mxu0 0.0
    %112 = vmatpush1.msra.mxu0 0.0
    %113 = vmatprep.subr.mxu0 0.0
    %114 = vmatpush1.msra.mxu0 0.0
    %115 = vmatprep.subr.mxu0 0.0
    %116 = vmatpush1.msra.mxu0 0.0
    %117 = vmatprep.subr.mxu0 0.0
    %118 = vmatpush1.msra.mxu0 0.0
    %119 = vmatprep.subr.mxu0 0.0
    %120 = vmatpush1.msra.mxu0 0.0
    %121 = vmatprep.subr.mxu0 0.0
    %122 = vmatpush1.msra.mxu0 0.0
    %123 = vmatprep.subr.mxu0 0.0
    %124 = vmatpush1.msra.mxu0 0.0
    %125 = vmatprep.subr.mxu0 0.0
    %126 = vmatpush1.msra.mxu0 0.0
    %127 = vmatprep.subr.mxu0 0.0
    %128 = vmatpush1.msra.mxu0 0.0
    %129 = vmatprep.mubr.f32.mxu0 0.0
    %130 = vmatmul.mubr.f32.gmra.mrb[0].mxu0 %v64
    %v131 = vpop.f32.mrb[0].mxu0
    %v132 = vadd.f32 0.0, %v131
    %v133 = vpop.f32.mrb[0].mxu0
    %134 = vdwg.mxu0
    %v135 = vmul.f32 %v132, %v132
    %vm136 = vcmask 1040384
    %v137 = vsel %vm136, %v135, 0.0
    %138 = vadd.xlane.f32.xlu0 %v137
    %v139 = vpop.xlane.xlu0 %138
    %v140 = vrot.slane %v139, 4
    %v141 = vadd.f32 %v139, %v140
    %v142 = vrot.slane %v141, 2
    %v143 = vadd.f32 %v141, %v142
    %v144 = vrot.slane %v143, 1
    %v145 = vadd.f32 %v143, %v144
    %s146 = vtos %v145
    %v147 = vstv %s146
    %v148 = vrsqrt.pop %v147
    %v149 = vmul.f32 %v147, %v148
    %vm150 = vcmp.eq.f32.partialorder %v147, inf
    %v151 = vsel %vm150, %v147, %v149
    %vm152 = vcmp.eq.f32.partialorder %v147, 0.0
    %v153 = vand.u32 %v147, 2147483648
    %v154 = vsel %vm152, %v153, %v151
    %s155 = vtos %v154
    %s156 = sadd.f32 %s155, 1e-12
    %v157 = vstv %s156
    %v158 = vrcp.pop %v157
    %s159 = vtos %v158
    %v160 = vstv %s159
    %v161 = vmul.f32 %v132, %v160
    %162 = vmatprep.subr.mxu0 0.0
    %163 = vmatpush1.xpose.msra.mxu0 %v48
    %164 = vmatprep.subr.mxu0 0.0
    %165 = vmatpush1.xpose.msra.mxu0 %v49
    %166 = vmatprep.subr.mxu0 0.0
    %167 = vmatpush1.xpose.msra.mxu0 %v50
    %168 = vmatprep.subr.mxu0 0.0
    %169 = vmatpush1.xpose.msra.mxu0 %v51
    %170 = vmatprep.subr.mxu0 0.0
    %171 = vmatpush1.xpose.msra.mxu0 %v52
    %172 = vmatprep.subr.mxu0 0.0
    %173 = vmatpush1.xpose.msra.mxu0 %v53
    %174 = vmatprep.subr.mxu0 0.0
    %175 = vmatpush1.xpose.msra.mxu0 %v54
    %176 = vmatprep.subr.mxu0 0.0
    %177 = vmatpush1.xpose.msra.mxu0 %v55
    %178 = vmatprep.subr.mxu0 0.0
    %179 = vmatpush1.xpose.msra.mxu0 %v56
    %180 = vmatprep.subr.mxu0 0.0
    %181 = vmatpush1.xpose.msra.mxu0 %v57
    %182 = vmatprep.subr.mxu0 0.0
    %183 = vmatpush1.xpose.msra.mxu0 %v58
    %184 = vmatprep.subr.mxu0 0.0
    %185 = vmatpush1.xpose.msra.mxu0 %v59
    %186 = vmatprep.subr.mxu0 0.0
    %187 = vmatpush1.xpose.msra.mxu0 %v60
    %188 = vmatprep.subr.mxu0 0.0
    %189 = vmatpush1.xpose.msra.mxu0 %v61
    %190 = vmatprep.subr.mxu0 0.0
    %191 = vmatpush1.xpose.msra.mxu0 %v62
    %192 = vmatprep.subr.mxu0 0.0
    %193 = vmatpush1.xpose.msra.mxu0 %v63
    %194 = vmatprep.subr.mxu0 0.0
    %195 = vmatpush1.xpose.msra.mxu0 0.0
    %196 = vmatprep.subr.mxu0 0.0
    %197 = vmatpush1.xpose.msra.mxu0 0.0
    %198 = vmatprep.subr.mxu0 0.0
    %199 = vmatpush1.xpose.msra.mxu0 0.0
    %200 = vmatprep.subr.mxu0 0.0
    %201 = vmatpush1.xpose.msra.mxu0 0.0
    %202 = vmatprep.subr.mxu0 0.0
    %203 = vmatpush1.xpose.msra.mxu0 0.0
    %204 = vmatprep.subr.mxu0 0.0
    %205 = vmatpush1.xpose.msra.mxu0 0.0
    %206 = vmatprep.subr.mxu0 0.0
    %207 = vmatpush1.xpose.msra.mxu0 0.0
    %208 = vmatprep.subr.mxu0 0.0
    %209 = vmatpush1.xpose.msra.mxu0 0.0
    %210 = vmatprep.subr.mxu0 0.0
    %211 = vmatpush1.xpose.msra.mxu0 0.0
    %212 = vmatprep.subr.mxu0 0.0
    %213 = vmatpush1.xpose.msra.mxu0 0.0
    %214 = vmatprep.subr.mxu0 0.0
    %215 = vmatpush1.xpose.msra.mxu0 0.0
    %216 = vmatprep.subr.mxu0 0.0
    %217 = vmatpush1.xpose.msra.mxu0 0.0
    %218 = vmatprep.subr.mxu0 0.0
    %219 = vmatpush1.xpose.msra.mxu0 0.0
    %220 = vmatprep.subr.mxu0 0.0
    %221 = vmatpush1.xpose.msra.mxu0 0.0
    %222 = vmatprep.subr.mxu0 0.0
    %223 = vmatpush1.xpose.msra.mxu0 0.0
    %224 = vmatprep.subr.mxu0 0.0
    %225 = vmatpush1.xpose.msra.mxu0 0.0
    %226 = vmatprep.mubr.f32.mxu0 0.0
    %227 = vmatmul.mubr.f32.gmra.mrb[0].mxu0 %v161
    %v228 = vpop.f32.mrb[0].mxu0
    %v229 = vadd.f32 0.0, %v228
    %v230 = vpop.f32.mrb[0].mxu0
    %231 = vdwg.mxu0
    %v232 = vmul.f32 %v229, %v229
    %v233 = vsel %vm136, %v232, 0.0
    %234 = vadd.xlane.f32.xlu0 %v233
    %v235 = vpop.xlane.xlu0 %234
    %v236 = vrot.slane %v235, 4
    %v237 = vadd.f32 %v235, %v236
    %v238 = vrot.slane %v237, 2
    %v239 = vadd.f32 %v237, %v238
    %v240 = vrot.slane %v239, 1
    %v241 = vadd.f32 %v239, %v240
    %s242 = vtos %v241
    %v243 = vstv %s242
    %v244 = vrsqrt.pop %v243
    %v245 = vmul.f32 %v243, %v244
    %vm246 = vcmp.eq.f32.partialorder %v243, inf
    %v247 = vsel %vm246, %v243, %v245
    %vm248 = vcmp.eq.f32.partialorder %v243, 0.0
    %v249 = vand.u32 %v243, 2147483648
    %v250 = vsel %vm248, %v249, %v247
    %s251 = vtos %v250
    %s252 = sadd.f32 %s251, 1e-12
    %v253 = vstv %s252
    %v254 = vrcp.pop %v253
    %s255 = vtos %v254
    %v256 = vstv %s255
    %v257 = vmul.f32 %v229, %v256
    %v258 = vmul.f32 %v257, %v229
    %v259 = vsel %vm136, %v258, 0.0
    %260 = vadd.xlane.f32.xlu0 %v259
    %v261 = vpop.xlane.xlu0 %260
    %v262 = vrot.slane %v261, 4
    %v263 = vadd.f32 %v261, %v262
    %v264 = vrot.slane %v263, 2
    %v265 = vadd.f32 %v263, %v264
    %v266 = vrot.slane %v265, 1
    %v267 = vadd.f32 %v265, %v266
    %s268 = vtos %v267
    %v269 = vstv %s268
    %v270 = vrcp.pop %v269
    %s271 = vtos %v270
    %v272 = vld [vmem:[#allocation2] sm:$0xff]
    %273 = vmatprep.subr.mxu0 0.0
    %274 = vmatpush1.xpose.msra.mxu0 %v48
    %275 = vmatprep.subr.mxu0 0.0
    %276 = vmatpush1.xpose.msra.mxu0 %v49
    %277 = vmatprep.subr.mxu0 0.0
    %278 = vmatpush1.xpose.msra.mxu0 %v50
    %279 = vmatprep.subr.mxu0 0.0
    %280 = vmatpush1.xpose.msra.mxu0 %v51
    %281 = vmatprep.subr.mxu0 0.0
    %282 = vmatpush1.xpose.msra.mxu0 %v52
    %283 = vmatprep.subr.mxu0 0.0
    %284 = vmatpush1.xpose.msra.mxu0 %v53
    %285 = vmatprep.subr.mxu0 0.0
    %286 = vmatpush1.xpose.msra.mxu0 %v54
    %287 = vmatprep.subr.mxu0 0.0
    %288 = vmatpush1.xpose.msra.mxu0 %v55
    %289 = vmatprep.subr.mxu0 0.0
    %290 = vmatpush1.xpose.msra.mxu0 %v56
    %291 = vmatprep.subr.mxu0 0.0
    %292 = vmatpush1.xpose.msra.mxu0 %v57
    %293 = vmatprep.subr.mxu0 0.0
    %294 = vmatpush1.xpose.msra.mxu0 %v58
    %295 = vmatprep.subr.mxu0 0.0
    %296 = vmatpush1.xpose.msra.mxu0 %v59
    %297 = vmatprep.subr.mxu0 0.0
    %298 = vmatpush1.xpose.msra.mxu0 %v60
    %299 = vmatprep.subr.mxu0 0.0
    %300 = vmatpush1.xpose.msra.mxu0 %v61
    %301 = vmatprep.subr.mxu0 0.0
    %302 = vmatpush1.xpose.msra.mxu0 %v62
    %303 = vmatprep.subr.mxu0 0.0
    %304 = vmatpush1.xpose.msra.mxu0 %v63
    %305 = vmatprep.subr.mxu0 0.0
    %306 = vmatpush1.xpose.msra.mxu0 0.0
    %307 = vmatprep.subr.mxu0 0.0
    %308 = vmatpush1.xpose.msra.mxu0 0.0
    %309 = vmatprep.subr.mxu0 0.0
    %310 = vmatpush1.xpose.msra.mxu0 0.0
    %311 = vmatprep.subr.mxu0 0.0
    %312 = vmatpush1.xpose.msra.mxu0 0.0
    %313 = vmatprep.subr.mxu0 0.0
    %314 = vmatpush1.xpose.msra.mxu0 0.0
    %315 = vmatprep.subr.mxu0 0.0
    %316 = vmatpush1.xpose.msra.mxu0 0.0
    %317 = vmatprep.subr.mxu0 0.0
    %318 = vmatpush1.xpose.msra.mxu0 0.0
    %319 = vmatprep.subr.mxu0 0.0
    %320 = vmatpush1.xpose.msra.mxu0 0.0
    %321 = vmatprep.subr.mxu0 0.0
    %322 = vmatpush1.xpose.msra.mxu0 0.0
    %323 = vmatprep.subr.mxu0 0.0
    %324 = vmatpush1.xpose.msra.mxu0 0.0
    %325 = vmatprep.subr.mxu0 0.0
    %326 = vmatpush1.xpose.msra.mxu0 0.0
    %327 = vmatprep.subr.mxu0 0.0
    %328 = vmatpush1.xpose.msra.mxu0 0.0
    %329 = vmatprep.subr.mxu0 0.0
    %330 = vmatpush1.xpose.msra.mxu0 0.0
    %331 = vmatprep.subr.mxu0 0.0
    %332 = vmatpush1.xpose.msra.mxu0 0.0
    %333 = vmatprep.subr.mxu0 0.0
    %334 = vmatpush1.xpose.msra.mxu0 0.0
    %335 = vmatprep.subr.mxu0 0.0
    %336 = vmatpush1.xpose.msra.mxu0 0.0
    %337 = vmatprep.mubr.f32.mxu0 0.0
    %338 = vmatmul.mubr.f32.gmra.mrb[0].mxu0 %v272
    %v339 = vpop.f32.mrb[0].mxu0
    %v340 = vadd.f32 0.0, %v339
    %v341 = vpop.f32.mrb[0].mxu0
    %342 = vdwg.mxu0
    %v343 = vstv %s271
    %v344 = vmul.f32 %v340, %v343
    %v345 = vld [vmem:[%s3] sm:$0x1]
    %v347 = vlaneseq
    %v348 = vshrl.u32 %v347, 7
    %v349 = vsub.s32 0, %v348
    %v350 = vrot.slane %v345, %v349
    %v352 = vadd.f32 %v344, %v350
    %353 = vst [vmem:[#allocation7] sm:$0xff] %v352
    %354 = vst [vmem:[#allocation8] sm:$0x1] %v257
    %355 = vst [vmem:[#allocation10] sm:$0x1] %v161
    // Predicated region
    $region26: #{tpu_custom_call.1} parent=1 // pred_check
      _
    $region27: #{tpu_custom_call.1} parent=1 // pred_check_branch
      %357 = sbr.rel (0) target = $region29
    $region28: #{tpu_custom_call.1} parent=1 // pred_region
      %s359 = ssub.s32 128, 128
      %360 = vsyncadd [#allocation4], %s359
      %s362 = sshll.u32 [#allocation7], 4
      %s363 = int_to_ptr.vmem [resolvable:$true] %s362
      %365 = dma.vmem_to_hbm [thread:$0]  %s363, 128, %s4, [#allocation4]
    $region29: #{tpu_custom_call.1} parent=1 // pred_fallthru
      _
    // Predicated region
    $region30: #{tpu_custom_call.1} parent=1 // pred_check
      _
    $region31: #{tpu_custom_call.1} parent=1 // pred_check_branch
      %367 = sbr.rel (0) target = $region33
    $region32: #{tpu_custom_call.1} parent=1 // pred_region
      %s369 = ssub.s32 16, 16
      %370 = vsyncadd [#allocation9], %s369
      %s372 = sshll.u32 [#allocation8], 4
      %s373 = int_to_ptr.vmem [resolvable:$true] %s372
      %375 = dma.vmem_to_hbm [thread:$0]  %s373, 16, %s5, [#allocation9]
    $region33: #{tpu_custom_call.1} parent=1 // pred_fallthru
      _
    // Predicated region
    $region34: #{tpu_custom_call.1} parent=1 // pred_check
      _
    $region35: #{tpu_custom_call.1} parent=1 // pred_check_branch
      %377 = sbr.rel (0) target = $region37
    $region36: #{tpu_custom_call.1} parent=1 // pred_region
      %s379 = ssub.s32 16, 16
      %380 = vsyncadd [#allocation9], %s379
      %s382 = sshll.u32 [#allocation10], 4
      %s383 = int_to_ptr.vmem [resolvable:$true] %s382
      %385 = dma.vmem_to_hbm [thread:$0]  %s383, 16, %s6, [#allocation9]
    $region37: #{tpu_custom_call.1} parent=1 // pred_fallthru
      _
    // Predicated region
    $region38: #{tpu_custom_call.1} parent=1 // pred_check
      _
    $region39: #{tpu_custom_call.1} parent=1 // pred_check_branch
      %387 = sbr.rel (0) target = $region41
    $region40: #{tpu_custom_call.1} parent=1 // pred_region
      %388 = dma.done [#allocation4], 128
    $region41: #{tpu_custom_call.1} parent=1 // pred_fallthru
      _
    // Predicated region
    $region42: #{tpu_custom_call.1} parent=1 // pred_check
      _
    $region43: #{tpu_custom_call.1} parent=1 // pred_check_branch
      %390 = sbr.rel (0) target = $region45
    $region44: #{tpu_custom_call.1} parent=1 // pred_region
      %391 = dma.done [#allocation9], 16
    $region45: #{tpu_custom_call.1} parent=1 // pred_fallthru
      _
    // Predicated region
    $region46: #{tpu_custom_call.1} parent=1 // pred_check
      _
    $region47: #{tpu_custom_call.1} parent=1 // pred_check_branch
      %393 = sbr.rel (0) target = $region49
    $region48: #{tpu_custom_call.1} parent=1 // pred_region
      %394 = dma.done [#allocation9], 16
    $region49: #{tpu_custom_call.1} parent=1 // pred_fallthru
      _
    %395 = vsyncpa [#allocation3], 1
    %396 = vsyncpa [#allocation6], 1
    %397 = vsyncpa [#allocation4], 1
    %398 = vsyncpa [#allocation9], 1

</llo_original>
